<compile_context>
chip_gen: v5e
topology: v5e:2x2
jax: 0.10.0
libtpu: 0.0.40
codegen_flags: <defaults>
</compile_context>

<pallas_src>
import jax
import jax.numpy as jnp
from jax.experimental import pallas as pl
from jax.experimental.pallas import tpu as pltpu


def _round_up(a: int, b: int) -> int:
    return (a + b - 1) // b * b


def _proj_kernel(x_ref, apt_ref, o_ref):
    """out_tile = x_tile @ AP^T   (full reduction inside the block, direct store)."""
    o_ref[...] = jnp.dot(
        x_ref[...], apt_ref[...], preferred_element_type=jnp.float32
    ).astype(o_ref.dtype)


def join_ap_linear_encoder_forward(x, xlens, P, A_weight, A_bias, *,
                                   tn=512,
                                   compute_dtype=jnp.bfloat16,
                                   out_dtype=jnp.float32):
    """x: [B, T, H], P: [V, D], A_weight: [H, D], A_bias: [H]."""
    B, T, H = x.shape
    V, D = P.shape
    N = B * T

    # --- AP^T = (P @ W_A^T + b_A)^T, computed once in plain jnp (tiny) -----------
    apt = (P.astype(jnp.float32) @ A_weight.astype(jnp.float32).T
           + A_bias.astype(jnp.float32)[None, :]).T            # [H, V]

    x2 = x.reshape(N, H).astype(compute_dtype)
    apt = apt.astype(compute_dtype)

    # --- tile the token axis only; TN a multiple of 8, grid covers ragged N ------
    TN = max(8, min(_round_up(tn, 8), _round_up(N, 8)))
    grid = (pl.cdiv(N, TN),)

    itemsize = jnp.dtype(compute_dtype).itemsize
    out2 = pl.pallas_call(
        _proj_kernel,
        out_shape=jax.ShapeDtypeStruct((N, V), out_dtype),
        grid=grid,
        in_specs=[
            # x: stream TN tokens per step, full H (no padding needed).
            pl.BlockSpec((TN, H), lambda i: (i, 0)),
            # AP^T: constant block index -> fetched once, resident in VMEM.
            pl.BlockSpec((H, V), lambda i: (0, 0)),
        ],
        out_specs=pl.BlockSpec((TN, V), lambda i: (i, 0)),
        compiler_params=pltpu.CompilerParams(
            dimension_semantics=("parallel",)),
        cost_estimate=pl.CostEstimate(
            flops=2 * N * H * V,
            transcendentals=0,
            bytes_accessed=(N * H * itemsize            # x, read once
                            + H * V * itemsize          # AP^T, read once
                            + N * V * jnp.dtype(out_dtype).itemsize)),
    )(x2, apt)

    out = out2.reshape(B, T, V)
    # TODO(synk): xlens is only passed through (a real LSTM head would consume it).
    return out, xlens


def reference_forward(x, xlens, P, A_weight, A_bias, compute_dtype=jnp.float32):
    AP = P @ A_weight.T + A_bias[None, :]                       # [V, H]
    out = jnp.einsum("bth,vh->btv",
                     x.astype(compute_dtype), AP.astype(compute_dtype),
                     preferred_element_type=jnp.float32)
    return out, xlens


if __name__ == "__main__":
    # Small shapes consistent with the module's forward.
    B, T = 2, 8          # batch, sequence length
    hdim = 32            # enc_head hidden dim (_hdim)
    pdim = 16            # phonological vector dim (P.shape[1])
    n_phonemes = 48      # number of phonemes (P.shape[0])

    key = jax.random.PRNGKey(0)
    k_x, k_p, k_w, k_b = jax.random.split(key, 4)

    # Deterministic synthetic parameters (P buffer ~ N(0,1); Linear ~ small uniform).
    P = jax.random.normal(k_p, (n_phonemes, pdim), dtype=jnp.float32)
    bound = 1.0 / (pdim ** 0.5)
    A_weight = jax.random.uniform(k_w, (hdim, pdim), dtype=jnp.float32,
                                  minval=-bound, maxval=bound)
    A_bias = jax.random.uniform(k_b, (hdim,), dtype=jnp.float32,
                                minval=-bound, maxval=bound)

    x = jax.random.normal(k_x, (B, T, hdim), dtype=jnp.float32)
    xlens = jnp.array([T, T - 2], dtype=jnp.int32)

    # --- default (bf16 inputs, f32 accumulate/output) -----------------------------
    out, out_lens = join_ap_linear_encoder_forward(x, xlens, P, A_weight, A_bias)
    out = jax.block_until_ready(out)
    assert out.shape == (B, T, n_phonemes)
    assert jnp.array_equal(out_lens, xlens)

    # Tight check against a reference that quantizes inputs identically (bf16 -> f32 acc).
    ref_bf16, _ = reference_forward(x, xlens, P, A_weight, A_bias,
                                    compute_dtype=jnp.bfloat16)
    assert jnp.allclose(out, ref_bf16, atol=1e-4, rtol=1e-4), "mismatch vs bf16 reference"
    # Loose sanity check against the exact f32 reference (bf16 input rounding only).
    ref_f32, _ = reference_forward(x, xlens, P, A_weight, A_bias)
    assert jnp.allclose(out, ref_f32, atol=2e-1, rtol=1e-1), "mismatch vs f32 reference"

    # --- f32 parity path + ragged last tile (N not a multiple of TN) --------------
    B2, T2 = 3, 5
    x2 = jax.random.normal(jax.random.PRNGKey(1), (B2, T2, hdim), dtype=jnp.float32)
    xlens2 = jnp.array([T2, T2 - 1, T2 - 2], dtype=jnp.int32)
    out2, _ = join_ap_linear_encoder_forward(x2, xlens2, P, A_weight, A_bias,
                                             tn=8, compute_dtype=jnp.float32)
    out2 = jax.block_until_ready(out2)
    ref2, _ = reference_forward(x2, xlens2, P, A_weight, A_bias)
    assert out2.shape == (B2, T2, n_phonemes)
    assert jnp.allclose(out2, ref2, atol=1e-4, rtol=1e-4), "mismatch vs f32 reference (ragged)"

    print("KERNEL_OK")
</pallas_src>

<mosaic_0001>
module attributes {stable_mosaic.version = 11 : i64} {
  func.func @_proj_kernel(%arg0: i32, %arg1: memref<16x32xbf16, #tpu.memory_space<vmem>>, %arg2: memref<32x48xbf16, #tpu.memory_space<vmem>>, %arg3: memref<16x48xf32, #tpu.memory_space<vmem>>) attributes {dimension_semantics = [#tpu.dimension_semantics<parallel>], iteration_bounds = array<i64: 1>, scalar_prefetch = 0 : i64, scratch_operands = 0 : i64, tpu.core_type = #tpu.core_type<tc>, window_params = [{transform_indices = @transform_0, window_bounds = array<i64: 16, 32>}, {pipeline_mode = #tpu.pipeline_mode<synchronous>, transform_indices = @transform_1, window_bounds = array<i64: 32, 48>}, {transform_indices = @transform_2, window_bounds = array<i64: 16, 48>}]} {
    %c0 = arith.constant 0 : index
    %c0_0 = arith.constant 0 : index
    %0 = vector.load %arg1[%c0, %c0_0] : memref<16x32xbf16, #tpu.memory_space<vmem>>, vector<16x32xbf16>
    %c0_1 = arith.constant 0 : index
    %c0_2 = arith.constant 0 : index
    %1 = vector.load %arg2[%c0_1, %c0_2] : memref<32x48xbf16, #tpu.memory_space<vmem>>, vector<32x48xbf16>
    %cst = arith.constant dense<0.000000e+00> : vector<16x48xf32>
    %2 = tpu.matmul %0, %1, %cst {dimension_numbers = #tpu.dot_dimension_numbers<[1], [0], [0], [1], [0, 0, 1, 1], [], []>} : vector<16x32xbf16>, vector<32x48xbf16>, vector<16x48xf32> -> vector<16x48xf32>
    %c0_3 = arith.constant 0 : index
    %c0_4 = arith.constant 0 : index
    %3 = vector.load %arg3[%c0_3, %c0_4] : memref<16x48xf32, #tpu.memory_space<vmem>>, vector<16x48xf32>
    tpu.vector_store %arg3[%c0_3, %c0_4], %2 {strides = array<i32>} : memref<16x48xf32, #tpu.memory_space<vmem>>, vector<16x48xf32>,
    return
  }
  func.func @transform_0(%arg0: i32) -> (i32, i32) {
    %c0_i32 = arith.constant 0 : i32
    %c0_i32_0 = arith.constant 0 : i32
    return %arg0, %c0_i32 : i32, i32
  }
  func.func @transform_1(%arg0: i32) -> (i32, i32) {
    %c0_i32 = arith.constant 0 : i32
    %c0_i32_0 = arith.constant 0 : i32
    %c0_i32_1 = arith.constant 0 : i32
    return %c0_i32, %c0_i32_0 : i32, i32
  }
  func.func @transform_2(%arg0: i32) -> (i32, i32) {
    %c0_i32 = arith.constant 0 : i32
    %c0_i32_0 = arith.constant 0 : i32
    return %arg0, %c0_i32 : i32, i32
  }
}

</mosaic_0001>

<llo_original>
// kernel: tpu_custom_call.1
$region0: #{tpu_custom_call.1}
  #allocation0 [shape = 'u32[]', space=smem, size = 0x4, offset = 0x4, fixed_abs, tag = 'smem constant byte address 0x4 - core index']
  #allocation1 [shape = 'u32[72,128]{1,0:T(1,128)}', space=vmem, size = 0x9000, scoped, tag = 'internal scratch']
  %s0 = inlined_call_operand.hbm [shape: bf16[16,32], index: 0, kind: input, shape index: {}]
  %s1 = inlined_call_operand.hbm [shape: bf16[32,48], index: 1, kind: input, shape index: {}]
  %s2 = inlined_call_operand.hbm [shape: f32[16,48], index: 2, kind: output, shape index: {}]
  %s3 = sld [smem:[#allocation0]]
  $region26: #{tpu_custom_call.1} parent=0
    _
  %s5 = ssub.s32 1, %s3
  %s6 = scalar_select 0, %s5, %s3
  $region1: #{tpu_custom_call.1} parent=0
    #allocation2 [shape = 'u8[4096]{0}', space=vmem, size = 0x1000, scoped, tag = 'input window, operand 0, single buffered']
    #allocation3 [shape = 's32[1]{0}', space=sflag, size = 0x4, scoped, tag = 'scoped memory for tpu_custom_call.1']
    #allocation4 [shape = 's32[1]{0}', space=sflag, size = 0x4, scoped, tag = 'scoped memory for tpu_custom_call.1']
    #allocation5 [shape = 'u8[8192]{0}', space=vmem, size = 0x2000, scoped, tag = 'input window, operand 1, single buffered']
    #allocation6 [shape = 's32[1]{0}', space=sflag, size = 0x4, scoped, tag = 'scoped memory for tpu_custom_call.1']
    #allocation7 [shape = 'u8[8192]{0}', space=vmem, size = 0x2000, scoped, tag = 'output window, operand 0, single buffered']
    %7 = vsyncpa [#allocation3], 0
    %8 = vsyncpa [#allocation6], 0
    %9 = vsyncpa [#allocation4], 0
    // Predicated region
    $region2: #{tpu_custom_call.1} parent=1 // pred_check
      _
    $region3: #{tpu_custom_call.1} parent=1 // pred_check_branch
      %11 = sbr.rel (0) target = $region5
    $region4: #{tpu_custom_call.1} parent=1 // pred_region
      %13 = vsyncadd [#allocation3], 0
      %s14 = sshll.u32 %s0, 4
      %s15 = int_to_ptr.hbm [resolvable:$true] %s14
      %s16 = sshll.u32 [#allocation2], 4
      %s17 = int_to_ptr.vmem [resolvable:$true] %s16
      %22 = dma.hbm_to_vmem [thread:$0]  %s15, 128, %s17, [#allocation3], 64, 64, 4
    $region5: #{tpu_custom_call.1} parent=1 // pred_fallthru
      _
    // Predicated region
    $region6: #{tpu_custom_call.1} parent=1 // pred_check
      _
    $region7: #{tpu_custom_call.1} parent=1 // pred_check_branch
      %24 = sbr.rel (0) target = $region9
    $region8: #{tpu_custom_call.1} parent=1 // pred_region
      %26 = vsyncadd [#allocation6], 0
      %s27 = sshll.u32 %s1, 4
      %s28 = int_to_ptr.hbm [resolvable:$true] %s27
      %s29 = sshll.u32 [#allocation5], 4
      %s30 = int_to_ptr.vmem [resolvable:$true] %s29
      %35 = dma.hbm_to_vmem [thread:$0]  %s28, 256, %s30, [#allocation6], 64, 64, 4
    $region9: #{tpu_custom_call.1} parent=1 // pred_fallthru
      _
    // Predicated region
    $region10: #{tpu_custom_call.1} parent=1 // pred_check
      _
    $region11: #{tpu_custom_call.1} parent=1 // pred_check_branch
      %37 = sbr.rel (0) target = $region13
    $region12: #{tpu_custom_call.1} parent=1 // pred_region
      %39 = dma.done [#allocation3], 128
    $region13: #{tpu_custom_call.1} parent=1 // pred_fallthru
      _
    // Predicated region
    $region14: #{tpu_custom_call.1} parent=1 // pred_check
      _
    $region15: #{tpu_custom_call.1} parent=1 // pred_check_branch
      %41 = sbr.rel (0) target = $region17
    $region16: #{tpu_custom_call.1} parent=1 // pred_region
      %43 = dma.done [#allocation6], 256
    $region17: #{tpu_custom_call.1} parent=1 // pred_fallthru
      _
    %v45 = vld [vmem:[#allocation2] sm:$0xf]
    %v46 = vld [vmem:[#allocation2 + $0x4] sm:$0xf]
    %v47 = vld [vmem:[#allocation5] sm:$0xf]
    %v48 = vld [vmem:[#allocation5 + $0x4] sm:$0xf]
    %v49 = vld [vmem:[#allocation5 + $0x8] sm:$0xf]
    %v50 = vld [vmem:[#allocation5 + $0xc] sm:$0xf]
    %v53 = vunpack.c.l.b16 %v45
    %v54 = vunpack.c.l.b16 %v46
    %v55 = vpack.c.b16 %v54, %v53
    %v60 = vunpack.c.l.b16 %v47
    %v61 = vunpack.c.l.b16 %v48
    %v62 = vunpack.c.l.b16 %v49
    %v63 = vunpack.c.l.b16 %v50
    %v64 = vpack.c.b16 %v61, %v60
    %v65 = vpack.c.b16 %v63, %v62
    %vm68 = vcmask 261120
    %v70 = vsel %vm68, %v55, 0
    %72 = vmatpush.bf16.msra.mxu0 0
    %73 = vmatpush.bf16.msra.mxu0 0
    %74 = vmatpush.bf16.msra.mxu0 0
    %75 = vmatpush.bf16.msra.mxu0 0
    %76 = vmatpush.bf16.msra.mxu0 0
    %77 = vmatpush.bf16.msra.mxu0 0
    %78 = vmatpush.bf16.msra.mxu0 %v65
    %79 = vmatpush.bf16.msra.mxu0 %v64
    %80 = vmatmul.bf16.gmra.mxu0 %v70
    %v81 = vpop.f32.mrf.mxu0
    %v82 = vadd.f32 0.0, %v81
    %v83 = vpop.f32.mrf.mxu0
    %v84 = vadd.f32 0.0, %v83
    %85 = vdwg.mxu0
    %vm86 = vcmask 392192
    %87 = vst.msk [vmem:[#allocation7] sm:$0xff] %vm86, %v82
    %88 = vst.msk [vmem:[#allocation7 + $0x8] sm:$0xff] %vm86, %v84
    // Predicated region
    $region18: #{tpu_custom_call.1} parent=1 // pred_check
      _
    $region19: #{tpu_custom_call.1} parent=1 // pred_check_branch
      %90 = sbr.rel (0) target = $region21
    $region20: #{tpu_custom_call.1} parent=1 // pred_region
      %92 = vsyncadd [#allocation4], 0
      %s93 = sshll.u32 [#allocation7], 4
      %s94 = int_to_ptr.vmem [resolvable:$true] %s93
      %s95 = sshll.u32 %s2, 4
      %s96 = int_to_ptr.hbm [resolvable:$true] %s95
      %101 = dma.vmem_to_hbm [thread:$0]  %s94, 256, %s96, [#allocation4], 128, 128, 8
    $region21: #{tpu_custom_call.1} parent=1 // pred_fallthru
      _
    // Predicated region
    $region22: #{tpu_custom_call.1} parent=1 // pred_check
      _
    $region23: #{tpu_custom_call.1} parent=1 // pred_check_branch
      %103 = sbr.rel (0) target = $region25
    $region24: #{tpu_custom_call.1} parent=1 // pred_region
      %105 = dma.done [#allocation4], 256
    $region25: #{tpu_custom_call.1} parent=1 // pred_fallthru
      _
    %106 = vsyncpa [#allocation3], 1
    %107 = vsyncpa [#allocation6], 1
    %108 = vsyncpa [#allocation4], 1

</llo_original>
